<compile_context>
chip_gen: v6e
topology: v6e:2x2x1
jax: 0.10.0
libtpu: 0.0.40
codegen_flags: <defaults>
</compile_context>

<pallas_src>
import math

import jax
import jax.numpy as jnp
from jax.experimental import pallas as pl
from jax.experimental.pallas import tpu as pltpu


def _add_kernel(a_ref, b_ref, o_ref):
    # Pure VPU elementwise add on the VMEM tile.
    o_ref[...] = a_ref[...] + b_ref[...]


_TARGET_BLOCK_BYTES = 4 * 1024 * 1024   # 2-4 MiB blocks sit at the HBM-roofline plateau
_MIN_PALLAS_BYTES = 256 * 1024          # below this, fixed pallas_call cost dominates
_SPLIT_BYTES = 1 * 1024 * 1024          # split single-block slabs above this into >=2 steps


def _sublane_multiple(itemsize):
    # Sublane packing multiple per element width (f32 -> 8, bf16 -> 16, int8/fp8 -> 32).
    return {4: 8, 2: 16, 1: 32}.get(itemsize, 8)


def _lane_dense_cols(shape):
    """Pick a lane-dense (multiple-of-128) column count for a copy-free 2D view.

    Prefers collapsing trailing dims of the original shape; otherwise any
    moderate divisor of the flat size. Returns None if no clean view exists.
    """
    total = math.prod(shape) if len(shape) else 1
    if total == 0 or total % 128 != 0:
        return None
    trailing = 1
    for d in reversed(shape):
        trailing *= d
        if trailing % 128 == 0 and 128 <= trailing <= 2048:
            return trailing
    for c in (512, 1024, 2048, 256, 128):
        if total % c == 0:
            return c
    return 128  # total % 128 == 0 guarantees this divides


def _choose_tile_rows(rows, cols, itemsize):
    """Block row count: ~4 MiB blocks, dtype-aligned, >=2 grid steps when worthwhile."""
    sublane = _sublane_multiple(itemsize)
    row_bytes = cols * itemsize
    tile_rows = max(sublane, _TARGET_BLOCK_BYTES // row_bytes)
    tile_rows = (tile_rows // sublane) * sublane
    if tile_rows < rows:
        return tile_rows
    # Whole slab fits one target-sized block. Split into >=2 steps (both v7x
    # TensorCores stream half each) when the slab is big enough to matter.
    if rows * row_bytes > _SPLIT_BYTES and rows >= 2 * sublane:
        half = pl.cdiv(rows, 2)
        half = pl.cdiv(half, sublane) * sublane
        if half < rows:
            return half
    # Single block covering the full slab (block dim == array dim is always legal).
    return rows


def pallas_add(a, b, *, min_bytes_for_pallas=_MIN_PALLAS_BYTES):
    """Elementwise add via a Pallas TPU kernel when profitable, else plain XLA add."""
    if a.shape != b.shape or a.dtype != b.dtype:
        # torch.add broadcasts; keep that behavior for odd callers.
        return a + b

    total = a.size
    itemsize = jnp.dtype(a.dtype).itemsize
    cols = _lane_dense_cols(a.shape)

    if cols is None or total * itemsize < min_bytes_for_pallas:
        # Tiny tensor or no pad-free lane-dense view: XLA's fused add is
        # already at HBM roofline; extra copies to reach the kernel lose.
        return a + b

    rows = total // cols
    tile_rows = _choose_tile_rows(rows, cols, itemsize)
    grid = (pl.cdiv(rows, tile_rows),)  # ragged last block is read-padded / write-masked

    a2 = a.reshape(rows, cols)
    b2 = b.reshape(rows, cols)

    out2 = pl.pallas_call(
        _add_kernel,
        out_shape=jax.ShapeDtypeStruct((rows, cols), a.dtype),
        grid_spec=pltpu.PrefetchScalarGridSpec(
            num_scalar_prefetch=0,
            grid=grid,
            in_specs=[
                pl.BlockSpec((tile_rows, cols), lambda i: (i, 0)),
                pl.BlockSpec((tile_rows, cols), lambda i: (i, 0)),
            ],
            out_specs=pl.BlockSpec((tile_rows, cols), lambda i: (i, 0)),
        ),
        compiler_params=pltpu.CompilerParams(
            # Grid steps shard across TensorCores on v7x (2 TCs); neutral on v5e/v6e.
            dimension_semantics=("parallel",),
            # Worst-case pipelined working set: 3 arrays x 2 buffers x 4 MiB = 24 MiB.
            vmem_limit_bytes=32 * 1024 * 1024,
        ),
    )(a2, b2)

    return out2.reshape(a.shape)


class AddPallas:
    """JAX/Pallas equivalent of ultralytics Add: forward(x) -> x[0] + x[1]."""

    def __init__(self, arg=None):
        self.arg = arg  # unused, kept for signature parity

    def __call__(self, x):
        return pallas_add(x[0], x[1])


if __name__ == "__main__":
    key = jax.random.PRNGKey(0)
    k0, k1, k2, k3 = jax.random.split(key, 4)

    # 1) Spec shape (NCHW: batch=2, channels=4, spatial=16x16).
    x0 = jax.random.normal(k0, (2, 4, 16, 16), dtype=jnp.float32)
    x1 = jax.random.normal(k1, (2, 4, 16, 16), dtype=jnp.float32)

    module = AddPallas(arg=None)
    out_small = jax.block_until_ready(module((x0, x1)))          # small-size fast path
    out_forced = jax.block_until_ready(
        pallas_add(x0, x1, min_bytes_for_pallas=0))               # force the Pallas kernel
    ref_small = x0 + x1
    assert out_small.shape == ref_small.shape and out_small.dtype == ref_small.dtype
    assert jnp.allclose(out_small, ref_small, atol=1e-6, rtol=1e-6)
    assert jnp.allclose(out_forced, ref_small, atol=1e-6, rtol=1e-6)

    # 2) Medium f32 shape: exercises the Pallas path with a 2-step grid,
    #    split tile (both v7x TCs) and a ragged (masked) last block.
    y0 = jax.random.normal(k2, (8, 17, 17, 128), dtype=jnp.float32)
    y1 = jax.random.normal(k3, (8, 17, 17, 128), dtype=jnp.float32)
    out_med = jax.block_until_ready(module((y0, y1)))
    ref_med = y0 + y1
    assert out_med.shape == ref_med.shape and out_med.dtype == ref_med.dtype
    assert jnp.allclose(out_med, ref_med, atol=1e-6, rtol=1e-6)

    # 3) bf16 coverage (dtype-aware sublane packing in the tile chooser).
    z0 = y0[:4].astype(jnp.bfloat16)
    z1 = y1[:4].astype(jnp.bfloat16)
    out_bf16 = jax.block_until_ready(module((z0, z1)))
    ref_bf16 = z0 + z1
    assert out_bf16.shape == ref_bf16.shape and out_bf16.dtype == ref_bf16.dtype
    assert jnp.allclose(out_bf16.astype(jnp.float32), ref_bf16.astype(jnp.float32))

    print("KERNEL_OK")
</pallas_src>

<mosaic_0001>
module attributes {stable_mosaic.version = 11 : i64} {
  func.func @_add_kernel(%arg0: i32, %arg1: memref<8x256xf32, #tpu.memory_space<vmem>>, %arg2: memref<8x256xf32, #tpu.memory_space<vmem>>, %arg3: memref<8x256xf32, #tpu.memory_space<vmem>>) attributes {dimension_semantics = [#tpu.dimension_semantics<parallel>], iteration_bounds = array<i64: 1>, scalar_prefetch = 0 : i64, scratch_operands = 0 : i64, tpu.core_type = #tpu.core_type<tc>, window_params = [{transform_indices = @transform_0, window_bounds = array<i64: 8, 256>}, {transform_indices = @transform_1, window_bounds = array<i64: 8, 256>}, {transform_indices = @transform_2, window_bounds = array<i64: 8, 256>}]} {
    %c0 = arith.constant 0 : index
    %c0_0 = arith.constant 0 : index
    %0 = vector.load %arg1[%c0, %c0_0] : memref<8x256xf32, #tpu.memory_space<vmem>>, vector<8x256xf32>
    %c0_1 = arith.constant 0 : index
    %c0_2 = arith.constant 0 : index
    %1 = vector.load %arg2[%c0_1, %c0_2] : memref<8x256xf32, #tpu.memory_space<vmem>>, vector<8x256xf32>
    %2 = arith.addf %0, %1 : vector<8x256xf32>
    %c0_3 = arith.constant 0 : index
    %c0_4 = arith.constant 0 : index
    %3 = vector.load %arg3[%c0_3, %c0_4] : memref<8x256xf32, #tpu.memory_space<vmem>>, vector<8x256xf32>
    tpu.vector_store %arg3[%c0_3, %c0_4], %2 {strides = array<i32>} : memref<8x256xf32, #tpu.memory_space<vmem>>, vector<8x256xf32>,
    return
  }
  func.func @transform_0(%arg0: i32) -> (i32, i32) {
    %c0_i32 = arith.constant 0 : i32
    %c0_i32_0 = arith.constant 0 : i32
    return %arg0, %c0_i32 : i32, i32
  }
  func.func @transform_1(%arg0: i32) -> (i32, i32) {
    %c0_i32 = arith.constant 0 : i32
    %c0_i32_0 = arith.constant 0 : i32
    return %arg0, %c0_i32 : i32, i32
  }
  func.func @transform_2(%arg0: i32) -> (i32, i32) {
    %c0_i32 = arith.constant 0 : i32
    %c0_i32_0 = arith.constant 0 : i32
    return %arg0, %c0_i32 : i32, i32
  }
}

</mosaic_0001>

<llo_original>
// kernel: tpu_custom_call.1
$region0: #{tpu_custom_call.1}
  #allocation0 [shape = 'u32[]', space=smem, size = 0x4, offset = 0x4, fixed_abs, tag = 'smem constant byte address 0x4 - core index']
  #allocation1 [shape = 'u32[144,128]{1,0:T(1,128)}', space=vmem, size = 0x12000, scoped, tag = 'internal scratch']
  %s0 = inlined_call_operand.hbm [shape: f32[8,256], index: 0, kind: input, shape index: {}]
  %s1 = inlined_call_operand.hbm [shape: f32[8,256], index: 1, kind: input, shape index: {}]
  %s2 = inlined_call_operand.hbm [shape: f32[8,256], index: 2, kind: output, shape index: {}]
  %s3 = sld [smem:[#allocation0]]
  $region26: #{tpu_custom_call.1} parent=0
    _
  %s5 = ssub.s32 1, %s3
  %s6 = scalar_select 0, %s5, %s3
  $region1: #{tpu_custom_call.1} parent=0
    #allocation2 [shape = 'u8[8192]{0}', space=vmem, size = 0x2000, scoped, tag = 'input window, operand 0, single buffered']
    #allocation3 [shape = 's32[1]{0}', space=sflag, size = 0x4, scoped, tag = 'scoped memory for tpu_custom_call.1']
    #allocation4 [shape = 's32[1]{0}', space=sflag, size = 0x4, scoped, tag = 'scoped memory for tpu_custom_call.1']
    #allocation5 [shape = 'u8[8192]{0}', space=vmem, size = 0x2000, scoped, tag = 'input window, operand 1, single buffered']
    #allocation6 [shape = 's32[1]{0}', space=sflag, size = 0x4, scoped, tag = 'scoped memory for tpu_custom_call.1']
    #allocation7 [shape = 'u8[8192]{0}', space=vmem, size = 0x2000, scoped, tag = 'output window, operand 0, single buffered']
    %7 = vsyncpa [#allocation3], 0
    %8 = vsyncpa [#allocation6], 0
    %9 = vsyncpa [#allocation4], 0
    // Predicated region
    $region2: #{tpu_custom_call.1} parent=1 // pred_check
      _
    $region3: #{tpu_custom_call.1} parent=1 // pred_check_branch
      %11 = sbr.rel (0) target = $region5
    $region4: #{tpu_custom_call.1} parent=1 // pred_region
      %s13 = ssub.s32 256, 256
      %14 = vsyncadd [#allocation3], %s13
      %s16 = sshll.u32 [#allocation2], 4
      %s17 = int_to_ptr.vmem [resolvable:$true] %s16
      %19 = dma.hbm_to_vmem [thread:$0]  %s0, 256, %s17, [#allocation3]
    $region5: #{tpu_custom_call.1} parent=1 // pred_fallthru
      _
    // Predicated region
    $region6: #{tpu_custom_call.1} parent=1 // pred_check
      _
    $region7: #{tpu_custom_call.1} parent=1 // pred_check_branch
      %21 = sbr.rel (0) target = $region9
    $region8: #{tpu_custom_call.1} parent=1 // pred_region
      %s23 = ssub.s32 256, 256
      %24 = vsyncadd [#allocation6], %s23
      %s26 = sshll.u32 [#allocation5], 4
      %s27 = int_to_ptr.vmem [resolvable:$true] %s26
      %29 = dma.hbm_to_vmem [thread:$0]  %s1, 256, %s27, [#allocation6]
    $region9: #{tpu_custom_call.1} parent=1 // pred_fallthru
      _
    // Predicated region
    $region10: #{tpu_custom_call.1} parent=1 // pred_check
      _
    $region11: #{tpu_custom_call.1} parent=1 // pred_check_branch
      %31 = sbr.rel (0) target = $region13
    $region12: #{tpu_custom_call.1} parent=1 // pred_region
      %32 = dma.done [#allocation3], 256
    $region13: #{tpu_custom_call.1} parent=1 // pred_fallthru
      _
    // Predicated region
    $region14: #{tpu_custom_call.1} parent=1 // pred_check
      _
    $region15: #{tpu_custom_call.1} parent=1 // pred_check_branch
      %34 = sbr.rel (0) target = $region17
    $region16: #{tpu_custom_call.1} parent=1 // pred_region
      %35 = dma.done [#allocation6], 256
    $region17: #{tpu_custom_call.1} parent=1 // pred_fallthru
      _
    %v36 = vld [vmem:[#allocation2] sm:$0xff]
    %v37 = vld [vmem:[#allocation2 + $0x8] sm:$0xff]
    %v38 = vld [vmem:[#allocation5] sm:$0xff]
    %v39 = vld [vmem:[#allocation5 + $0x8] sm:$0xff]
    %v40 = vadd.f32 %v36, %v38
    %v41 = vadd.f32 %v37, %v39
    %42 = vst [vmem:[#allocation7] sm:$0xff] %v40
    %43 = vst [vmem:[#allocation7 + $0x8] sm:$0xff] %v41
    // Predicated region
    $region18: #{tpu_custom_call.1} parent=1 // pred_check
      _
    $region19: #{tpu_custom_call.1} parent=1 // pred_check_branch
      %45 = sbr.rel (0) target = $region21
    $region20: #{tpu_custom_call.1} parent=1 // pred_region
      %s47 = ssub.s32 256, 256
      %48 = vsyncadd [#allocation4], %s47
      %s50 = sshll.u32 [#allocation7], 4
      %s51 = int_to_ptr.vmem [resolvable:$true] %s50
      %53 = dma.vmem_to_hbm [thread:$0]  %s51, 256, %s2, [#allocation4]
    $region21: #{tpu_custom_call.1} parent=1 // pred_fallthru
      _
    // Predicated region
    $region22: #{tpu_custom_call.1} parent=1 // pred_check
      _
    $region23: #{tpu_custom_call.1} parent=1 // pred_check_branch
      %55 = sbr.rel (0) target = $region25
    $region24: #{tpu_custom_call.1} parent=1 // pred_region
      %56 = dma.done [#allocation4], 256
    $region25: #{tpu_custom_call.1} parent=1 // pred_fallthru
      _
    %57 = vsyncpa [#allocation3], 1
    %58 = vsyncpa [#allocation6], 1
    %59 = vsyncpa [#allocation4], 1

</llo_original>
